<compile_context>
chip_gen: v7x
topology: tpu7x:2x2x1
jax: 0.10.0
libtpu: 0.0.40
codegen_flags: <defaults>
</compile_context>

<pallas_src>
import functools

import jax
import jax.numpy as jnp
from jax.experimental import pallas as pl
from jax.experimental.pallas import tpu as pltpu


def _leaky_relu(x, negative_slope=0.01):
    # max(x, a*x) == leaky_relu(x) for 0 < a < 1; mul+max instead of cmp+sel+mul.
    return jnp.maximum(x, negative_slope * x)


def _round_up(n, m):
    return ((n + m - 1) // m) * m


def _choose_tile(batch, block_m):
    """Pick the batch tile: minimize padding waste, prefer >=2 grid steps."""
    b8 = _round_up(batch, 8)
    if b8 <= 256:
        return b8  # single small tile
    candidates = [c for c in (256, 512, 1024, 2048) if c <= max(256, block_m)]
    best_key, best_c = None, None
    for c in candidates:
        padded = _round_up(batch, c)
        waste = padded - batch
        steps = padded // c
        # Minimal waste first; among ties prefer >=2 steps (v7x megacore), then
        # the larger tile (amortizes per-step pipeline overhead).
        key = (waste, 0 if steps >= 2 else 1, -c)
        if best_key is None or key < best_key:
            best_key, best_c = key, c
    return best_c


def discriminator_kernel(
    z_ref,
    w1_ref, b1_ref,
    w2_ref, b2_ref,
    w3_ref, b3_ref,
    w4_ref, b4_ref,
    w5_ref, b5_ref,
    out_ref,
):
    """One batch tile of the fused 5-layer MLP.

    Weights stay resident in VMEM across the batch grid (constant index_map);
    only the [tm, D_pad] activation tile and the [tm, 1] output tile stream.
    """
    x = z_ref[...].astype(jnp.float32)

    def dense(h, w_ref, b_ref):
        # MXU matmul in the weights' dtype (bf16 by default), f32 accumulation,
        # f32 bias add on the VPU.
        return jnp.dot(h.astype(w_ref.dtype), w_ref[...],
                       preferred_element_type=jnp.float32) + b_ref[...]

    # Linear -> LeakyReLU(0.01) -> Dropout(0.1) blocks.
    # TODO(synk): training-mode Dropout(0.1) omitted (eval semantics = identity).
    x = _leaky_relu(dense(x, w1_ref, b1_ref))   # [tm, 256]
    x = _leaky_relu(dense(x, w2_ref, b2_ref))   # [tm, 512]
    x = _leaky_relu(dense(x, w3_ref, b3_ref))   # [tm, 256]
    x = _leaky_relu(dense(x, w4_ref, b4_ref))   # [tm, 128]

    # Layer 5: Linear(128, 1) + Sigmoid.  N=1 matmul done as a VPU lane
    # reduction against the weight row (frees an MXU pass).  The [tm, 1]
    # column is stored directly -> 4 B/row of HBM writeback.
    w5_row = w5_ref[...].astype(jnp.float32)                           # [1, 128]
    logit = jnp.sum(x * w5_row, axis=-1, keepdims=True) + b5_ref[...]  # [tm, 1]
    validity = jax.nn.sigmoid(logit)
    out_ref[...] = validity.astype(out_ref.dtype)


@functools.partial(jax.jit, static_argnames=("block_m", "compute_dtype"))
def discriminator_forward(z, params, *, block_m=1024, compute_dtype=jnp.bfloat16):
    """z: [B, D] float32.  Returns validity: [B, 1] float32."""
    batch, dim = z.shape

    tm = _choose_tile(batch, block_m)
    padded_b = _round_up(batch, tm)
    dim_pad = max(128, _round_up(dim, 128))   # lane-dense input DMA / clean K

    pad_rows = padded_b - batch
    pad_cols = dim_pad - dim
    if pad_rows or pad_cols:
        z = jnp.pad(z, ((0, pad_rows), (0, pad_cols)))

    (w1, b1), (w2, b2), (w3, b3), (w4, b4), (w5, b5) = params
    if pad_cols:
        w1 = jnp.pad(w1, ((0, pad_cols), (0, 0)))   # zero rows: padded features no-op

    def w_cast(w):
        return w.astype(compute_dtype)

    def b_row(b):
        return b.reshape(1, -1).astype(jnp.float32)

    flat_inputs = [
        z,
        w_cast(w1), b_row(b1),
        w_cast(w2), b_row(b2),
        w_cast(w3), b_row(b3),
        w_cast(w4), b_row(b4),
        w5.reshape(1, -1).astype(jnp.float32),   # [1, 128] row for the VPU reduction
        b5.reshape(1, 1).astype(jnp.float32),
    ]

    def resident(shape):
        # Constant block index -> Pallas keeps the buffer resident (no re-DMA).
        return pl.BlockSpec(shape, lambda i: (0, 0))

    in_specs = [
        pl.BlockSpec((tm, dim_pad), lambda i: (i, 0)),   # z: streamed per batch tile
        resident((dim_pad, 256)), resident((1, 256)),
        resident((256, 512)), resident((1, 512)),
        resident((512, 256)), resident((1, 256)),
        resident((256, 128)), resident((1, 128)),
        resident((1, 128)), resident((1, 1)),
    ]

    out = pl.pallas_call(
        discriminator_kernel,
        out_shape=jax.ShapeDtypeStruct((padded_b, 1), jnp.float32),
        grid=(padded_b // tm,),
        in_specs=in_specs,
        out_specs=pl.BlockSpec((tm, 1), lambda i: (i, 0)),
        compiler_params=pltpu.CompilerParams(
            # TODO(synk): on v7x consider pltpu.CORE_PARALLEL here; "parallel"
            # is kept for portability across v5e/v6e/v7x.
            dimension_semantics=("parallel",),
            vmem_limit_bytes=48 * 1024 * 1024,
        ),
    )(*flat_inputs)

    return out[:batch, :]


def init_discriminator_params(key, output_dim_z):
    """Deterministic init mimicking PyTorch nn.Linear default (uniform +-1/sqrt(fan_in))."""
    dims = [output_dim_z, 256, 512, 256, 128, 1]
    params = []
    for i in range(len(dims) - 1):
        fan_in, fan_out = dims[i], dims[i + 1]
        key, kw, kb = jax.random.split(key, 3)
        bound = 1.0 / jnp.sqrt(fan_in)
        w = jax.random.uniform(kw, (fan_in, fan_out), jnp.float32, -bound, bound)
        bias = jax.random.uniform(kb, (fan_out,), jnp.float32, -bound, bound)
        params.append((w, bias))
    return params


def _reference_forward(z, params):
    """Pure-JAX f32 reference matching the PyTorch module (eval mode)."""
    x = z
    for i, (w, bias) in enumerate(params):
        x = x @ w + bias
        if i < len(params) - 1:
            x = jnp.where(x > 0, x, 0.01 * x)
        else:
            x = jax.nn.sigmoid(x)
    return x


if __name__ == "__main__":
    OUTPUT_DIM_Z = 32
    BATCH = 8

    key = jax.random.PRNGKey(0)
    key, kz = jax.random.split(key)
    z = jax.random.normal(kz, (BATCH, OUTPUT_DIM_Z), jnp.float32)
    params = init_discriminator_params(key, OUTPUT_DIM_Z)

    ref = _reference_forward(z, params)

    # Exact-semantics check: f32 weights on the MXU.
    out_f32 = discriminator_forward(z, params, compute_dtype=jnp.float32)
    jax.block_until_ready(out_f32)
    assert out_f32.shape == (BATCH, 1)
    assert jnp.allclose(out_f32, ref, atol=1e-4, rtol=1e-4), float(jnp.max(jnp.abs(out_f32 - ref)))

    # Performance default: bf16 MXU operands, f32 accumulation (looser tolerance).
    out_bf16 = discriminator_forward(z, params)
    jax.block_until_ready(out_bf16)
    assert out_bf16.shape == (BATCH, 1)
    assert jnp.allclose(out_bf16, ref, atol=5e-2, rtol=5e-2), float(jnp.max(jnp.abs(out_bf16 - ref)))

    print("KERNEL_OK")
</pallas_src>

<mosaic_0001>
module attributes {stable_mosaic.version = 11 : i64} {
  func.func @discriminator_kernel(%arg0: i32, %arg1: memref<8x128xf32, #tpu.memory_space<vmem>>, %arg2: memref<128x256xf32, #tpu.memory_space<vmem>>, %arg3: memref<1x256xf32, #tpu.memory_space<vmem>>, %arg4: memref<256x512xf32, #tpu.memory_space<vmem>>, %arg5: memref<1x512xf32, #tpu.memory_space<vmem>>, %arg6: memref<512x256xf32, #tpu.memory_space<vmem>>, %arg7: memref<1x256xf32, #tpu.memory_space<vmem>>, %arg8: memref<256x128xf32, #tpu.memory_space<vmem>>, %arg9: memref<1x128xf32, #tpu.memory_space<vmem>>, %arg10: memref<1x128xf32, #tpu.memory_space<vmem>>, %arg11: memref<1x1xf32, #tpu.memory_space<vmem>>, %arg12: memref<8x1xf32, #tpu.memory_space<vmem>>) attributes {dimension_semantics = [#tpu.dimension_semantics<parallel>], iteration_bounds = array<i64: 1>, scalar_prefetch = 0 : i64, scratch_operands = 0 : i64, tpu.core_type = #tpu.core_type<tc>, window_params = [{transform_indices = @transform_0, window_bounds = array<i64: 8, 128>}, {pipeline_mode = #tpu.pipeline_mode<synchronous>, transform_indices = @transform_1, window_bounds = array<i64: 128, 256>}, {pipeline_mode = #tpu.pipeline_mode<synchronous>, transform_indices = @transform_2, window_bounds = array<i64: 1, 256>}, {pipeline_mode = #tpu.pipeline_mode<synchronous>, transform_indices = @transform_3, window_bounds = array<i64: 256, 512>}, {pipeline_mode = #tpu.pipeline_mode<synchronous>, transform_indices = @transform_4, window_bounds = array<i64: 1, 512>}, {pipeline_mode = #tpu.pipeline_mode<synchronous>, transform_indices = @transform_5, window_bounds = array<i64: 512, 256>}, {pipeline_mode = #tpu.pipeline_mode<synchronous>, transform_indices = @transform_6, window_bounds = array<i64: 1, 256>}, {pipeline_mode = #tpu.pipeline_mode<synchronous>, transform_indices = @transform_7, window_bounds = array<i64: 256, 128>}, {pipeline_mode = #tpu.pipeline_mode<synchronous>, transform_indices = @transform_8, window_bounds = array<i64: 1, 128>}, {pipeline_mode = #tpu.pipeline_mode<synchronous>, transform_indices = @transform_9, window_bounds = array<i64: 1, 128>}, {pipeline_mode = #tpu.pipeline_mode<synchronous>, transform_indices = @transform_10, window_bounds = array<i64: 1, 1>}, {transform_indices = @transform_11, window_bounds = array<i64: 8, 1>}]} {
    %c0 = arith.constant 0 : index
    %c0_0 = arith.constant 0 : index
    %0 = vector.load %arg1[%c0, %c0_0] : memref<8x128xf32, #tpu.memory_space<vmem>>, vector<8x128xf32>
    %c0_1 = arith.constant 0 : index
    %c0_2 = arith.constant 0 : index
    %1 = vector.load %arg2[%c0_1, %c0_2] : memref<128x256xf32, #tpu.memory_space<vmem>>, vector<128x256xf32>
    %cst = arith.constant dense<0.000000e+00> : vector<8x256xf32>
    %2 = tpu.matmul %0, %1, %cst {dimension_numbers = #tpu.dot_dimension_numbers<[1], [0], [0], [1], [0, 0, 1, 1], [], []>} : vector<8x128xf32>, vector<128x256xf32>, vector<8x256xf32> -> vector<8x256xf32>
    %c0_3 = arith.constant 0 : index
    %c0_4 = arith.constant 0 : index
    %3 = vector.load %arg3[%c0_3, %c0_4] : memref<1x256xf32, #tpu.memory_space<vmem>>, vector<1x256xf32>
    %4 = vector.broadcast %3 : vector<1x256xf32> to vector<8x256xf32>
    %5 = arith.addf %2, %4 : vector<8x256xf32>
    %cst_5 = arith.constant 0.00999999977 : f32
    %6 = vector.broadcast %cst_5 : f32 to vector<8x256xf32>
    %7 = arith.mulf %6, %5 : vector<8x256xf32>
    %8 = arith.maximumf %5, %7 : vector<8x256xf32>
    %c0_6 = arith.constant 0 : index
    %c0_7 = arith.constant 0 : index
    %9 = vector.load %arg4[%c0_6, %c0_7] : memref<256x512xf32, #tpu.memory_space<vmem>>, vector<256x512xf32>
    %cst_8 = arith.constant dense<0.000000e+00> : vector<8x512xf32>
    %10 = tpu.matmul %8, %9, %cst_8 {dimension_numbers = #tpu.dot_dimension_numbers<[1], [0], [0], [1], [0, 0, 1, 1], [], []>} : vector<8x256xf32>, vector<256x512xf32>, vector<8x512xf32> -> vector<8x512xf32>
    %c0_9 = arith.constant 0 : index
    %c0_10 = arith.constant 0 : index
    %11 = vector.load %arg5[%c0_9, %c0_10] : memref<1x512xf32, #tpu.memory_space<vmem>>, vector<1x512xf32>
    %12 = vector.broadcast %11 : vector<1x512xf32> to vector<8x512xf32>
    %13 = arith.addf %10, %12 : vector<8x512xf32>
    %cst_11 = arith.constant 0.00999999977 : f32
    %14 = vector.broadcast %cst_11 : f32 to vector<8x512xf32>
    %15 = arith.mulf %14, %13 : vector<8x512xf32>
    %16 = arith.maximumf %13, %15 : vector<8x512xf32>
    %c0_12 = arith.constant 0 : index
    %c0_13 = arith.constant 0 : index
    %17 = vector.load %arg6[%c0_12, %c0_13] : memref<512x256xf32, #tpu.memory_space<vmem>>, vector<512x256xf32>
    %cst_14 = arith.constant dense<0.000000e+00> : vector<8x256xf32>
    %18 = tpu.matmul %16, %17, %cst_14 {dimension_numbers = #tpu.dot_dimension_numbers<[1], [0], [0], [1], [0, 0, 1, 1], [], []>} : vector<8x512xf32>, vector<512x256xf32>, vector<8x256xf32> -> vector<8x256xf32>
    %c0_15 = arith.constant 0 : index
    %c0_16 = arith.constant 0 : index
    %19 = vector.load %arg7[%c0_15, %c0_16] : memref<1x256xf32, #tpu.memory_space<vmem>>, vector<1x256xf32>
    %20 = vector.broadcast %19 : vector<1x256xf32> to vector<8x256xf32>
    %21 = arith.addf %18, %20 : vector<8x256xf32>
    %cst_17 = arith.constant 0.00999999977 : f32
    %22 = vector.broadcast %cst_17 : f32 to vector<8x256xf32>
    %23 = arith.mulf %22, %21 : vector<8x256xf32>
    %24 = arith.maximumf %21, %23 : vector<8x256xf32>
    %c0_18 = arith.constant 0 : index
    %c0_19 = arith.constant 0 : index
    %25 = vector.load %arg8[%c0_18, %c0_19] : memref<256x128xf32, #tpu.memory_space<vmem>>, vector<256x128xf32>
    %cst_20 = arith.constant dense<0.000000e+00> : vector<8x128xf32>
    %26 = tpu.matmul %24, %25, %cst_20 {dimension_numbers = #tpu.dot_dimension_numbers<[1], [0], [0], [1], [0, 0, 1, 1], [], []>} : vector<8x256xf32>, vector<256x128xf32>, vector<8x128xf32> -> vector<8x128xf32>
    %c0_21 = arith.constant 0 : index
    %c0_22 = arith.constant 0 : index
    %27 = vector.load %arg9[%c0_21, %c0_22] : memref<1x128xf32, #tpu.memory_space<vmem>>, vector<1x128xf32>
    %28 = vector.broadcast %27 : vector<1x128xf32> to vector<8x128xf32>
    %29 = arith.addf %26, %28 : vector<8x128xf32>
    %cst_23 = arith.constant 0.00999999977 : f32
    %30 = vector.broadcast %cst_23 : f32 to vector<8x128xf32>
    %31 = arith.mulf %30, %29 : vector<8x128xf32>
    %32 = arith.maximumf %29, %31 : vector<8x128xf32>
    %c0_24 = arith.constant 0 : index
    %c0_25 = arith.constant 0 : index
    %33 = vector.load %arg10[%c0_24, %c0_25] : memref<1x128xf32, #tpu.memory_space<vmem>>, vector<1x128xf32>
    %34 = vector.broadcast %33 : vector<1x128xf32> to vector<8x128xf32>
    %35 = arith.mulf %32, %34 : vector<8x128xf32>
    %cst_26 = arith.constant dense<0.000000e+00> : vector<8xf32>
    %36 = vector.multi_reduction <add>, %35, %cst_26 [1] : vector<8x128xf32> to vector<8xf32>
    %37 = vector.shape_cast %36 : vector<8xf32> to vector<8x1xf32>
    %c0_27 = arith.constant 0 : index
    %c0_28 = arith.constant 0 : index
    %38 = vector.load %arg11[%c0_27, %c0_28] : memref<1x1xf32, #tpu.memory_space<vmem>>, vector<1x1xf32>
    %39 = vector.broadcast %38 : vector<1x1xf32> to vector<8x1xf32>
    %40 = arith.addf %37, %39 : vector<8x1xf32>
    %41 = arith.negf %40 : vector<8x1xf32>
    %42 = math.exp %41 : vector<8x1xf32>
    %cst_29 = arith.constant 1.000000e+00 : f32
    %43 = vector.broadcast %cst_29 : f32 to vector<8x1xf32>
    %44 = arith.addf %43, %42 : vector<8x1xf32>
    %45 = arith.divf %43, %44 : vector<8x1xf32>
    %c0_30 = arith.constant 0 : index
    %c0_31 = arith.constant 0 : index
    %46 = vector.load %arg12[%c0_30, %c0_31] : memref<8x1xf32, #tpu.memory_space<vmem>>, vector<8x1xf32>
    tpu.vector_store %arg12[%c0_30, %c0_31], %45 {strides = array<i32>} : memref<8x1xf32, #tpu.memory_space<vmem>>, vector<8x1xf32>,
    return
  }
  func.func @transform_0(%arg0: i32) -> (i32, i32) {
    %c0_i32 = arith.constant 0 : i32
    %c0_i32_0 = arith.constant 0 : i32
    return %arg0, %c0_i32 : i32, i32
  }
  func.func @transform_1(%arg0: i32) -> (i32, i32) {
    %c0_i32 = arith.constant 0 : i32
    %c0_i32_0 = arith.constant 0 : i32
    %c0_i32_1 = arith.constant 0 : i32
    return %c0_i32, %c0_i32_0 : i32, i32
  }
  func.func @transform_2(%arg0: i32) -> (i32, i32) {
    %c0_i32 = arith.constant 0 : i32
    %c0_i32_0 = arith.constant 0 : i32
    %c0_i32_1 = arith.constant 0 : i32
    return %c0_i32, %c0_i32_0 : i32, i32
  }
  func.func @transform_3(%arg0: i32) -> (i32, i32) {
    %c0_i32 = arith.constant 0 : i32
    %c0_i32_0 = arith.constant 0 : i32
    %c0_i32_1 = arith.constant 0 : i32
    return %c0_i32, %c0_i32_0 : i32, i32
  }
  func.func @transform_4(%arg0: i32) -> (i32, i32) {
    %c0_i32 = arith.constant 0 : i32
    %c0_i32_0 = arith.constant 0 : i32
    %c0_i32_1 = arith.constant 0 : i32
    return %c0_i32, %c0_i32_0 : i32, i32
  }
  func.func @transform_5(%arg0: i32) -> (i32, i32) {
    %c0_i32 = arith.constant 0 : i32
    %c0_i32_0 = arith.constant 0 : i32
    %c0_i32_1 = arith.constant 0 : i32
    return %c0_i32, %c0_i32_0 : i32, i32
  }
  func.func @transform_6(%arg0: i32) -> (i32, i32) {
    %c0_i32 = arith.constant 0 : i32
    %c0_i32_0 = arith.constant 0 : i32
    %c0_i32_1 = arith.constant 0 : i32
    return %c0_i32, %c0_i32_0 : i32, i32
  }
  func.func @transform_7(%arg0: i32) -> (i32, i32) {
    %c0_i32 = arith.constant 0 : i32
    %c0_i32_0 = arith.constant 0 : i32
    %c0_i32_1 = arith.constant 0 : i32
    return %c0_i32, %c0_i32_0 : i32, i32
  }
  func.func @transform_8(%arg0: i32) -> (i32, i32) {
    %c0_i32 = arith.constant 0 : i32
    %c0_i32_0 = arith.constant 0 : i32
    %c0_i32_1 = arith.constant 0 : i32
    return %c0_i32, %c0_i32_0 : i32, i32
  }
  func.func @transform_9(%arg0: i32) -> (i32, i32) {
    %c0_i32 = arith.constant 0 : i32
    %c0_i32_0 = arith.constant 0 : i32
    %c0_i32_1 = arith.constant 0 : i32
    return %c0_i32, %c0_i32_0 : i32, i32
  }
  func.func @transform_10(%arg0: i32) -> (i32, i32) {
    %c0_i32 = arith.constant 0 : i32
    %c0_i32_0 = arith.constant 0 : i32
    %c0_i32_1 = arith.constant 0 : i32
    return %c0_i32, %c0_i32_0 : i32, i32
  }
  func.func @transform_11(%arg0: i32) -> (i32, i32) {
    %c0_i32 = arith.constant 0 : i32
    %c0_i32_0 = arith.constant 0 : i32
    return %arg0, %c0_i32 : i32, i32
  }
}

</mosaic_0001>

<llo_original>
// kernel: discriminator_forward.1
$region0: #{discriminator_forward.1}
  #allocation0 [shape = 'u32[]', space=smem, size = 0x4, offset = 0x4, fixed_abs, tag = 'smem constant byte address 0x4 - core index']
  #allocation1 [shape = 'u32[144,128]{1,0:T(1,128)}', space=vmem, size = 0x12000, scoped, tag = 'internal scratch']
  #allocation2 [shape = 'f32[1,1]{1,0:T(1,128)S(1)}', space=vmem, size = 0x200, scoped, tag = 'scoped memory for discriminator_forward.1']
  %s0 = inlined_call_operand.vmem [shape: f32[8,128], index: 0, kind: input, shape index: {}]
  %s1 = inlined_call_operand.vmem [shape: f32[128,256], index: 1, kind: input, shape index: {}]
  %s2 = inlined_call_operand.vmem [shape: f32[1,256], index: 2, kind: input, shape index: {}]
  %s3 = inlined_call_operand.hbm [shape: f32[256,512], index: 3, kind: input, shape index: {}]
  %s4 = inlined_call_operand.vmem [shape: f32[1,512], index: 4, kind: input, shape index: {}]
  %s5 = inlined_call_operand.hbm [shape: f32[512,256], index: 5, kind: input, shape index: {}]
  %s6 = inlined_call_operand.vmem [shape: f32[1,256], index: 6, kind: input, shape index: {}]
  %s7 = inlined_call_operand.vmem [shape: f32[256,128], index: 7, kind: input, shape index: {}]
  %s8 = inlined_call_operand.vmem [shape: f32[1,128], index: 8, kind: input, shape index: {}]
  %s9 = inlined_call_operand.vmem [shape: f32[1,128], index: 9, kind: input, shape index: {}]
  %s10 = inlined_call_operand.<no memory space> [shape: f32[1,1], index: 10, kind: input, shape index: {}]
  %s11 = inlined_call_operand.vmem [shape: f32[8,1], index: 11, kind: output, shape index: {}]
  %s12 = sld [smem:[#allocation0]]
  $region62: #{discriminator_forward.1} parent=0
    _
  %s14 = ssub.s32 1, %s12
  %s15 = scalar_select 0, %s14, %s12
  %v16 = vstv %s10
  %17 = vst [vmem:[#allocation2] sm:$0x1] %v16
  $region1: #{discriminator_forward.1} parent=0
    #allocation3 [shape = 'u8[524288]{0}', space=vmem, size = 0x80000, scoped, tag = 'input window, operand 3, single buffered']
    #allocation4 [shape = 's32[1]{0}', space=sflag, size = 0x4, scoped, tag = 'scoped memory for discriminator_forward.1']
    #allocation5 [shape = 'u8[524288]{0}', space=vmem, size = 0x80000, scoped, tag = 'input window, operand 5, single buffered']
    #allocation6 [shape = 's32[1]{0}', space=sflag, size = 0x4, scoped, tag = 'scoped memory for discriminator_forward.1']
    %18 = vsyncpa [#allocation4], 0
    %19 = vsyncpa [#allocation6], 0
    // Predicated region
    $region2: #{discriminator_forward.1} parent=1 // pred_check
      _
    $region3: #{discriminator_forward.1} parent=1 // pred_check_branch
      %21 = sbr.rel (0) target = $region5
    $region4: #{discriminator_forward.1} parent=1 // pred_region
      _
    $region5: #{discriminator_forward.1} parent=1 // pred_fallthru
      _
    // Predicated region
    $region6: #{discriminator_forward.1} parent=1 // pred_check
      _
    $region7: #{discriminator_forward.1} parent=1 // pred_check_branch
      %23 = sbr.rel (0) target = $region9
    $region8: #{discriminator_forward.1} parent=1 // pred_region
      _
    $region9: #{discriminator_forward.1} parent=1 // pred_fallthru
      _
    // Predicated region
    $region10: #{discriminator_forward.1} parent=1 // pred_check
      _
    $region11: #{discriminator_forward.1} parent=1 // pred_check_branch
      %25 = sbr.rel (0) target = $region13
    $region12: #{discriminator_forward.1} parent=1 // pred_region
      _
    $region13: #{discriminator_forward.1} parent=1 // pred_fallthru
      _
    // Predicated region
    $region14: #{discriminator_forward.1} parent=1 // pred_check
      _
    $region15: #{discriminator_forward.1} parent=1 // pred_check_branch
      %27 = sbr.rel (0) target = $region17
    $region16: #{discriminator_forward.1} parent=1 // pred_region
      %s29 = ssub.s32 16384, 16384
      %30 = vsyncadd [#allocation4], %s29
      %s31 = sshll.u32 [#allocation3], 4
      %s32 = int_to_ptr.vmem [resolvable:$true] %s31
      %37 = dma.hbm_to_vmem [thread:$0]  %s3, 16384, %s32, [#allocation4], 512, 512, 32
    $region17: #{discriminator_forward.1} parent=1 // pred_fallthru
      _
    // Predicated region
    $region18: #{discriminator_forward.1} parent=1 // pred_check
      _
    $region19: #{discriminator_forward.1} parent=1 // pred_check_branch
      %39 = sbr.rel (0) target = $region21
    $region20: #{discriminator_forward.1} parent=1 // pred_region
      _
    $region21: #{discriminator_forward.1} parent=1 // pred_fallthru
      _
    // Predicated region
    $region22: #{discriminator_forward.1} parent=1 // pred_check
      _
    $region23: #{discriminator_forward.1} parent=1 // pred_check_branch
      %41 = sbr.rel (0) target = $region25
    $region24: #{discriminator_forward.1} parent=1 // pred_region
      %s43 = ssub.s32 16384, 16384
      %44 = vsyncadd [#allocation6], %s43
      %s45 = sshll.u32 [#allocation5], 4
      %s46 = int_to_ptr.vmem [resolvable:$true] %s45
      %51 = dma.hbm_to_vmem [thread:$0]  %s5, 16384, %s46, [#allocation6], 256, 256, 16
    $region25: #{discriminator_forward.1} parent=1 // pred_fallthru
      _
    // Predicated region
    $region26: #{discriminator_forward.1} parent=1 // pred_check
      _
    $region27: #{discriminator_forward.1} parent=1 // pred_check_branch
      %53 = sbr.rel (0) target = $region29
    $region28: #{discriminator_forward.1} parent=1 // pred_region
      _
    $region29: #{discriminator_forward.1} parent=1 // pred_fallthru
      _
    // Predicated region
    $region30: #{discriminator_forward.1} parent=1 // pred_check
      _
    $region31: #{discriminator_forward.1} parent=1 // pred_check_branch
      %55 = sbr.rel (0) target = $region33
    $region32: #{discriminator_forward.1} parent=1 // pred_region
      _
    $region33: #{discriminator_forward.1} parent=1 // pred_fallthru
      _
    // Predicated region
    $region34: #{discriminator_forward.1} parent=1 // pred_check
      _
    $region35: #{discriminator_forward.1} parent=1 // pred_check_branch
      %57 = sbr.rel (0) target = $region37
    $region36: #{discriminator_forward.1} parent=1 // pred_region
      _
    $region37: #{discriminator_forward.1} parent=1 // pred_fallthru
      _
    // Predicated region
    $region38: #{discriminator_forward.1} parent=1 // pred_check
      _
    $region39: #{discriminator_forward.1} parent=1 // pred_check_branch
      %59 = sbr.rel (0) target = $region41
    $region40: #{discriminator_forward.1} parent=1 // pred_region
      _
    $region41: #{discriminator_forward.1} parent=1 // pred_fallthru
      _
    // Predicated region
    $region42: #{discriminator_forward.1} parent=1 // pred_check
      _
    $region43: #{discriminator_forward.1} parent=1 // pred_check_branch
      %61 = sbr.rel (0) target = $region45
    $region44: #{discriminator_forward.1} parent=1 // pred_region
      _
    $region45: #{discriminator_forward.1} parent=1 // pred_fallthru
      _
    // Predicated region
    $region46: #{discriminator_forward.1} parent=1 // pred_check
      _
    $region47: #{discriminator_forward.1} parent=1 // pred_check_branch
      %63 = sbr.rel (0) target = $region49
    $region48: #{discriminator_forward.1} parent=1 // pred_region
      %64 = dma.done [#allocation4], 16384
    $region49: #{discriminator_forward.1} parent=1 // pred_fallthru
      _
    // Predicated region
    $region50: #{discriminator_forward.1} parent=1 // pred_check
      _
    $region51: #{discriminator_forward.1} parent=1 // pred_check_branch
      %66 = sbr.rel (0) target = $region53
    $region52: #{discriminator_forward.1} parent=1 // pred_region
      %67 = dma.done [#allocation6], 16384
    $region53: #{discriminator_forward.1} parent=1 // pred_fallthru
      _
    %v68 = vld [vmem:[%s0] sm:$0xff]
    %v69 = vld [vmem:[%s1] sm:$0xff]
    %v70 = vld [vmem:[%s1 + $0x8] sm:$0xff]
    %v71 = vld [vmem:[%s1 + $0x10] sm:$0xff]
    %v72 = vld [vmem:[%s1 + $0x18] sm:$0xff]
    %v73 = vld [vmem:[%s1 + $0x20] sm:$0xff]
    %v74 = vld [vmem:[%s1 + $0x28] sm:$0xff]
    %v75 = vld [vmem:[%s1 + $0x30] sm:$0xff]
    %v76 = vld [vmem:[%s1 + $0x38] sm:$0xff]
    %v77 = vld [vmem:[%s1 + $0x40] sm:$0xff]
    %v78 = vld [vmem:[%s1 + $0x48] sm:$0xff]
    %v79 = vld [vmem:[%s1 + $0x50] sm:$0xff]
    %v80 = vld [vmem:[%s1 + $0x58] sm:$0xff]
    %v81 = vld [vmem:[%s1 + $0x60] sm:$0xff]
    %v82 = vld [vmem:[%s1 + $0x68] sm:$0xff]
    %v83 = vld [vmem:[%s1 + $0x70] sm:$0xff]
    %v84 = vld [vmem:[%s1 + $0x78] sm:$0xff]
    %v85 = vld [vmem:[%s1 + $0x80] sm:$0xff]
    %v86 = vld [vmem:[%s1 + $0x88] sm:$0xff]
    %v87 = vld [vmem:[%s1 + $0x90] sm:$0xff]
    %v88 = vld [vmem:[%s1 + $0x98] sm:$0xff]
    %v89 = vld [vmem:[%s1 + $0xa0] sm:$0xff]
    %v90 = vld [vmem:[%s1 + $0xa8] sm:$0xff]
    %v91 = vld [vmem:[%s1 + $0xb0] sm:$0xff]
    %v92 = vld [vmem:[%s1 + $0xb8] sm:$0xff]
    %v93 = vld [vmem:[%s1 + $0xc0] sm:$0xff]
    %v94 = vld [vmem:[%s1 + $0xc8] sm:$0xff]
    %v95 = vld [vmem:[%s1 + $0xd0] sm:$0xff]
    %v96 = vld [vmem:[%s1 + $0xd8] sm:$0xff]
    %v97 = vld [vmem:[%s1 + $0xe0] sm:$0xff]
    %v98 = vld [vmem:[%s1 + $0xe8] sm:$0xff]
    %v99 = vld [vmem:[%s1 + $0xf0] sm:$0xff]
    %v100 = vld [vmem:[%s1 + $0xf8] sm:$0xff]
    %v101 = vld [vmem:[%s2] sm:$0x3]
    %v103 = vlaneseq
    %v104 = vshrl.u32 %v103, 7
    %v105 = vsub.s32 0, %v104
    %v106 = vrot.slane %v101, %v105
    %v107 = vlaneseq
    %v108 = vshrl.u32 %v107, 7
    %v109 = vsub.s32 1, %v108
    %v110 = vrot.slane %v101, %v109
    %113 = vmatprep.subr.mxu0 %v70
    %114 = vmatpush1.msra.mxu0 %v69
    %115 = vmatprep.subr.mxu0 %v72
    %116 = vmatpush1.msra.mxu0 %v71
    %117 = vmatprep.subr.mxu0 %v74
    %118 = vmatpush1.msra.mxu0 %v73
    %119 = vmatprep.subr.mxu0 %v76
    %120 = vmatpush1.msra.mxu0 %v75
    %121 = vmatprep.subr.mxu0 %v78
    %122 = vmatpush1.msra.mxu0 %v77
    %123 = vmatprep.subr.mxu0 %v80
    %124 = vmatpush1.msra.mxu0 %v79
    %125 = vmatprep.subr.mxu0 %v82
    %126 = vmatpush1.msra.mxu0 %v81
    %127 = vmatprep.subr.mxu0 %v84
    %128 = vmatpush1.msra.mxu0 %v83
    %129 = vmatprep.subr.mxu0 %v86
    %130 = vmatpush1.msra.mxu0 %v85
    %131 = vmatprep.subr.mxu0 %v88
    %132 = vmatpush1.msra.mxu0 %v87
    %133 = vmatprep.subr.mxu0 %v90
    %134 = vmatpush1.msra.mxu0 %v89
    %135 = vmatprep.subr.mxu0 %v92
    %136 = vmatpush1.msra.mxu0 %v91
    %137 = vmatprep.subr.mxu0 %v94
    %138 = vmatpush1.msra.mxu0 %v93
    %139 = vmatprep.subr.mxu0 %v96
    %140 = vmatpush1.msra.mxu0 %v95
    %141 = vmatprep.subr.mxu0 %v98
    %142 = vmatpush1.msra.mxu0 %v97
    %143 = vmatprep.subr.mxu0 %v100
    %144 = vmatpush1.msra.mxu0 %v99
    %145 = vmatprep.subr.mxu0 0.0
    %146 = vmatpush1.msra.mxu0 0.0
    %147 = vmatprep.subr.mxu0 0.0
    %148 = vmatpush1.msra.mxu0 0.0
    %149 = vmatprep.subr.mxu0 0.0
    %150 = vmatpush1.msra.mxu0 0.0
    %151 = vmatprep.subr.mxu0 0.0
    %152 = vmatpush1.msra.mxu0 0.0
    %153 = vmatprep.subr.mxu0 0.0
    %154 = vmatpush1.msra.mxu0 0.0
    %155 = vmatprep.subr.mxu0 0.0
    %156 = vmatpush1.msra.mxu0 0.0
    %157 = vmatprep.subr.mxu0 0.0
    %158 = vmatpush1.msra.mxu0 0.0
    %159 = vmatprep.subr.mxu0 0.0
    %160 = vmatpush1.msra.mxu0 0.0
    %161 = vmatprep.subr.mxu0 0.0
    %162 = vmatpush1.msra.mxu0 0.0
    %163 = vmatprep.subr.mxu0 0.0
    %164 = vmatpush1.msra.mxu0 0.0
    %165 = vmatprep.subr.mxu0 0.0
    %166 = vmatpush1.msra.mxu0 0.0
    %167 = vmatprep.subr.mxu0 0.0
    %168 = vmatpush1.msra.mxu0 0.0
    %169 = vmatprep.subr.mxu0 0.0
    %170 = vmatpush1.msra.mxu0 0.0
    %171 = vmatprep.subr.mxu0 0.0
    %172 = vmatpush1.msra.mxu0 0.0
    %173 = vmatprep.subr.mxu0 0.0
    %174 = vmatpush1.msra.mxu0 0.0
    %175 = vmatprep.subr.mxu0 0.0
    %176 = vmatpush1.msra.mxu0 0.0
    %177 = vmatprep.mubr.f32.mxu0 0.0
    %178 = vmatmul.mubr.f32.gmra.mrb[0].mxu0 %v68
    %v179 = vpop.f32.mrb[0].mxu0
    %v180 = vadd.f32 %v106, %v179
    %v181 = vpop.f32.mrb[0].mxu0
    %v182 = vadd.f32 %v110, %v181
    %183 = vdwg.mxu0
    %v184 = vmul.f32 %v180, 0.01
    %v185 = vmul.f32 %v182, 0.01
    %v186 = vmax.f32 %v180, %v184
    %v187 = vmax.f32 %v182, %v185
    %v188 = vld [vmem:[#allocation3] sm:$0xff]
    %v189 = vld [vmem:[#allocation3 + $0x8] sm:$0xff]
    %v190 = vld [vmem:[#allocation3 + $0x10] sm:$0xff]
    %v191 = vld [vmem:[#allocation3 + $0x18] sm:$0xff]
    %v192 = vld [vmem:[#allocation3 + $0x20] sm:$0xff]
    %v193 = vld [vmem:[#allocation3 + $0x28] sm:$0xff]
    %v194 = vld [vmem:[#allocation3 + $0x30] sm:$0xff]
    %v195 = vld [vmem:[#allocation3 + $0x38] sm:$0xff]
    %v196 = vld [vmem:[#allocation3 + $0x40] sm:$0xff]
    %v197 = vld [vmem:[#allocation3 + $0x48] sm:$0xff]
    %v198 = vld [vmem:[#allocation3 + $0x50] sm:$0xff]
    %v199 = vld [vmem:[#allocation3 + $0x58] sm:$0xff]
    %v200 = vld [vmem:[#allocation3 + $0x60] sm:$0xff]
    %v201 = vld [vmem:[#allocation3 + $0x68] sm:$0xff]
    %v202 = vld [vmem:[#allocation3 + $0x70] sm:$0xff]
    %v203 = vld [vmem:[#allocation3 + $0x78] sm:$0xff]
    %v204 = vld [vmem:[#allocation3 + $0x80] sm:$0xff]
    %v205 = vld [vmem:[#allocation3 + $0x88] sm:$0xff]
    %v206 = vld [vmem:[#allocation3 + $0x90] sm:$0xff]
    %v207 = vld [vmem:[#allocation3 + $0x98] sm:$0xff]
    %v208 = vld [vmem:[#allocation3 + $0xa0] sm:$0xff]
    %v209 = vld [vmem:[#allocation3 + $0xa8] sm:$0xff]
    %v210 = vld [vmem:[#allocation3 + $0xb0] sm:$0xff]
    %v211 = vld [vmem:[#allocation3 + $0xb8] sm:$0xff]
    %v212 = vld [vmem:[#allocation3 + $0xc0] sm:$0xff]
    %v213 = vld [vmem:[#allocation3 + $0xc8] sm:$0xff]
    %v214 = vld [vmem:[#allocation3 + $0xd0] sm:$0xff]
    %v215 = vld [vmem:[#allocation3 + $0xd8] sm:$0xff]
    %v216 = vld [vmem:[#allocation3 + $0xe0] sm:$0xff]
    %v217 = vld [vmem:[#allocation3 + $0xe8] sm:$0xff]
    %v218 = vld [vmem:[#allocation3 + $0xf0] sm:$0xff]
    %v219 = vld [vmem:[#allocation3 + $0xf8] sm:$0xff]
    %v220 = vld [vmem:[#allocation3 + $0x100] sm:$0xff]
    %v221 = vld [vmem:[#allocation3 + $0x108] sm:$0xff]
    %v222 = vld [vmem:[#allocation3 + $0x110] sm:$0xff]
    %v223 = vld [vmem:[#allocation3 + $0x118] sm:$0xff]
    %v224 = vld [vmem:[#allocation3 + $0x120] sm:$0xff]
    %v225 = vld [vmem:[#allocation3 + $0x128] sm:$0xff]
    %v226 = vld [vmem:[#allocation3 + $0x130] sm:$0xff]
    %v227 = vld [vmem:[#allocation3 + $0x138] sm:$0xff]
    %v228 = vld [vmem:[#allocation3 + $0x140] sm:$0xff]
    %v229 = vld [vmem:[#allocation3 + $0x148] sm:$0xff]
    %v230 = vld [vmem:[#allocation3 + $0x150] sm:$0xff]
    %v231 = vld [vmem:[#allocation3 + $0x158] sm:$0xff]
    %v232 = vld [vmem:[#allocation3 + $0x160] sm:$0xff]
    %v233 = vld [vmem:[#allocation3 + $0x168] sm:$0xff]
    %v234 = vld [vmem:[#allocation3 + $0x170] sm:$0xff]
    %v235 = vld [vmem:[#allocation3 + $0x178] sm:$0xff]
    %v236 = vld [vmem:[#allocation3 + $0x180] sm:$0xff]
    %v237 = vld [vmem:[#allocation3 + $0x188] sm:$0xff]
    %v238 = vld [vmem:[#allocation3 + $0x190] sm:$0xff]
    %v239 = vld [vmem:[#allocation3 + $0x198] sm:$0xff]
    %v240 = vld [vmem:[#allocation3 + $0x1a0] sm:$0xff]
    %v241 = vld [vmem:[#allocation3 + $0x1a8] sm:$0xff]
    %v242 = vld [vmem:[#allocation3 + $0x1b0] sm:$0xff]
    %v243 = vld [vmem:[#allocation3 + $0x1b8] sm:$0xff]
    %v244 = vld [vmem:[#allocation3 + $0x1c0] sm:$0xff]
    %v245 = vld [vmem:[#allocation3 + $0x1c8] sm:$0xff]
    %v246 = vld [vmem:[#allocation3 + $0x1d0] sm:$0xff]
    %v247 = vld [vmem:[#allocation3 + $0x1d8] sm:$0xff]
    %v248 = vld [vmem:[#allocation3 + $0x1e0] sm:$0xff]
    %v249 = vld [vmem:[#allocation3 + $0x1e8] sm:$0xff]
    %v250 = vld [vmem:[#allocation3 + $0x1f0] sm:$0xff]
    %v251 = vld [vmem:[#allocation3 + $0x1f8] sm:$0xff]
    %v252 = vld [vmem:[#allocation3 + $0x200] sm:$0xff]
    %v253 = vld [vmem:[#allocation3 + $0x208] sm:$0xff]
    %v254 = vld [vmem:[#allocation3 + $0x210] sm:$0xff]
    %v255 = vld [vmem:[#allocation3 + $0x218] sm:$0xff]
    %v256 = vld [vmem:[#allocation3 + $0x220] sm:$0xff]
    %v257 = vld [vmem:[#allocation3 + $0x228] sm:$0xff]
    %v258 = vld [vmem:[#allocation3 + $0x230] sm:$0xff]
    %v259 = vld [vmem:[#allocation3 + $0x238] sm:$0xff]
    %v260 = vld [vmem:[#allocation3 + $0x240] sm:$0xff]
    %v261 = vld [vmem:[#allocation3 + $0x248] sm:$0xff]
    %v262 = vld [vmem:[#allocation3 + $0x250] sm:$0xff]
    %v263 = vld [vmem:[#allocation3 + $0x258] sm:$0xff]
    %v264 = vld [vmem:[#allocation3 + $0x260] sm:$0xff]
    %v265 = vld [vmem:[#allocation3 + $0x268] sm:$0xff]
    %v266 = vld [vmem:[#allocation3 + $0x270] sm:$0xff]
    %v267 = vld [vmem:[#allocation3 + $0x278] sm:$0xff]
    %v268 = vld [vmem:[#allocation3 + $0x280] sm:$0xff]
    %v269 = vld [vmem:[#allocation3 + $0x288] sm:$0xff]
    %v270 = vld [vmem:[#allocation3 + $0x290] sm:$0xff]
    %v271 = vld [vmem:[#allocation3 + $0x298] sm:$0xff]
    %v272 = vld [vmem:[#allocation3 + $0x2a0] sm:$0xff]
    %v273 = vld [vmem:[#allocation3 + $0x2a8] sm:$0xff]
    %v274 = vld [vmem:[#allocation3 + $0x2b0] sm:$0xff]
    %v275 = vld [vmem:[#allocation3 + $0x2b8] sm:$0xff]
    %v276 = vld [vmem:[#allocation3 + $0x2c0] sm:$0xff]
    %v277 = vld [vmem:[#allocation3 + $0x2c8] sm:$0xff]
    %v278 = vld [vmem:[#allocation3 + $0x2d0] sm:$0xff]
    %v279 = vld [vmem:[#allocation3 + $0x2d8] sm:$0xff]
    %v280 = vld [vmem:[#allocation3 + $0x2e0] sm:$0xff]
    %v281 = vld [vmem:[#allocation3 + $0x2e8] sm:$0xff]
    %v282 = vld [vmem:[#allocation3 + $0x2f0] sm:$0xff]
    %v283 = vld [vmem:[#allocation3 + $0x2f8] sm:$0xff]
    %v284 = vld [vmem:[#allocation3 + $0x300] sm:$0xff]
    %v285 = vld [vmem:[#allocation3 + $0x308] sm:$0xff]
    %v286 = vld [vmem:[#allocation3 + $0x310] sm:$0xff]
    %v287 = vld [vmem:[#allocation3 + $0x318] sm:$0xff]
    %v288 = vld [vmem:[#allocation3 + $0x320] sm:$0xff]
    %v289 = vld [vmem:[#allocation3 + $0x328] sm:$0xff]
    %v290 = vld [vmem:[#allocation3 + $0x330] sm:$0xff]
    %v291 = vld [vmem:[#allocation3 + $0x338] sm:$0xff]
    %v292 = vld [vmem:[#allocation3 + $0x340] sm:$0xff]
    %v293 = vld [vmem:[#allocation3 + $0x348] sm:$0xff]
    %v294 = vld [vmem:[#allocation3 + $0x350] sm:$0xff]
    %v295 = vld [vmem:[#allocation3 + $0x358] sm:$0xff]
    %v296 = vld [vmem:[#allocation3 + $0x360] sm:$0xff]
    %v297 = vld [vmem:[#allocation3 + $0x368] sm:$0xff]
    %v298 = vld [vmem:[#allocation3 + $0x370] sm:$0xff]
    %v299 = vld [vmem:[#allocation3 + $0x378] sm:$0xff]
    %v300 = vld [vmem:[#allocation3 + $0x380] sm:$0xff]
    %v301 = vld [vmem:[#allocation3 + $0x388] sm:$0xff]
    %v302 = vld [vmem:[#allocation3 + $0x390] sm:$0xff]
    %v303 = vld [vmem:[#allocation3 + $0x398] sm:$0xff]
    %v304 = vld [vmem:[#allocation3 + $0x3a0] sm:$0xff]
    %v305 = vld [vmem:[#allocation3 + $0x3a8] sm:$0xff]
    %v306 = vld [vmem:[#allocation3 + $0x3b0] sm:$0xff]
    %v307 = vld [vmem:[#allocation3 + $0x3b8] sm:$0xff]
    %v308 = vld [vmem:[#allocation3 + $0x3c0] sm:$0xff]
    %v309 = vld [vmem:[#allocation3 + $0x3c8] sm:$0xff]
    %v310 = vld [vmem:[#allocation3 + $0x3d0] sm:$0xff]
    %v311 = vld [vmem:[#allocation3 + $0x3d8] sm:$0xff]
    %v312 = vld [vmem:[#allocation3 + $0x3e0] sm:$0xff]
    %v313 = vld [vmem:[#allocation3 + $0x3e8] sm:$0xff]
    %v314 = vld [vmem:[#allocation3 + $0x3f0] sm:$0xff]
    %v315 = vld [vmem:[#allocation3 + $0x3f8] sm:$0xff]
    %v316 = vld [vmem:[%s4] sm:$0xf]
    %v318 = vlaneseq
    %v319 = vshrl.u32 %v318, 7
    %v320 = vsub.s32 0, %v319
    %v321 = vrot.slane %v316, %v320
    %v322 = vlaneseq
    %v323 = vshrl.u32 %v322, 7
    %v324 = vsub.s32 1, %v323
    %v325 = vrot.slane %v316, %v324
    %v326 = vlaneseq
    %v327 = vshrl.u32 %v326, 7
    %v328 = vsub.s32 2, %v327
    %v329 = vrot.slane %v316, %v328
    %v330 = vlaneseq
    %v331 = vshrl.u32 %v330, 7
    %v332 = vsub.s32 3, %v331
    %v333 = vrot.slane %v316, %v332
    %338 = vmatprep.subr.mxu0 %v189
    %339 = vmatpush1.msra.mxu0 %v188
    %340 = vmatprep.subr.mxu0 %v193
    %341 = vmatpush1.msra.mxu0 %v192
    %342 = vmatprep.subr.mxu0 %v197
    %343 = vmatpush1.msra.mxu0 %v196
    %344 = vmatprep.subr.mxu0 %v201
    %345 = vmatpush1.msra.mxu0 %v200
    %346 = vmatprep.subr.mxu0 %v205
    %347 = vmatpush1.msra.mxu0 %v204
    %348 = vmatprep.subr.mxu0 %v209
    %349 = vmatpush1.msra.mxu0 %v208
    %350 = vmatprep.subr.mxu0 %v213
    %351 = vmatpush1.msra.mxu0 %v212
    %352 = vmatprep.subr.mxu0 %v217
    %353 = vmatpush1.msra.mxu0 %v216
    %354 = vmatprep.subr.mxu0 %v221
    %355 = vmatpush1.msra.mxu0 %v220
    %356 = vmatprep.subr.mxu0 %v225
    %357 = vmatpush1.msra.mxu0 %v224
    %358 = vmatprep.subr.mxu0 %v229
    %359 = vmatpush1.msra.mxu0 %v228
    %360 = vmatprep.subr.mxu0 %v233
    %361 = vmatpush1.msra.mxu0 %v232
    %362 = vmatprep.subr.mxu0 %v237
    %363 = vmatpush1.msra.mxu0 %v236
    %364 = vmatprep.subr.mxu0 %v241
    %365 = vmatpush1.msra.mxu0 %v240
    %366 = vmatprep.subr.mxu0 %v245
    %367 = vmatpush1.msra.mxu0 %v244
    %368 = vmatprep.subr.mxu0 %v249
    %369 = vmatpush1.msra.mxu0 %v248
    %370 = vmatprep.subr.mxu0 %v253
    %371 = vmatpush1.msra.mxu0 %v252
    %372 = vmatprep.subr.mxu0 %v257
    %373 = vmatpush1.msra.mxu0 %v256
    %374 = vmatprep.subr.mxu0 %v261
    %375 = vmatpush1.msra.mxu0 %v260
    %376 = vmatprep.subr.mxu0 %v265
    %377 = vmatpush1.msra.mxu0 %v264
    %378 = vmatprep.subr.mxu0 %v269
    %379 = vmatpush1.msra.mxu0 %v268
    %380 = vmatprep.subr.mxu0 %v273
    %381 = vmatpush1.msra.mxu0 %v272
    %382 = vmatprep.subr.mxu0 %v277
    %383 = vmatpush1.msra.mxu0 %v276
    %384 = vmatprep.subr.mxu0 %v281
    %385 = vmatpush1.msra.mxu0 %v280
    %386 = vmatprep.subr.mxu0 %v285
    %387 = vmatpush1.msra.mxu0 %v284
    %388 = vmatprep.subr.mxu0 %v289
    %389 = vmatpush1.msra.mxu0 %v288
    %390 = vmatprep.subr.mxu0 %v293
    %391 = vmatpush1.msra.mxu0 %v292
    %392 = vmatprep.subr.mxu0 %v297
    %393 = vmatpush1.msra.mxu0 %v296
    %394 = vmatprep.subr.mxu0 %v301
    %395 = vmatpush1.msra.mxu0 %v300
    %396 = vmatprep.subr.mxu0 %v305
    %397 = vmatpush1.msra.mxu0 %v304
    %398 = vmatprep.subr.mxu0 %v309
    %399 = vmatpush1.msra.mxu0 %v308
    %400 = vmatprep.subr.mxu0 %v313
    %401 = vmatpush1.msra.mxu0 %v312
    %402 = vmatprep.mubr.f32.mxu0 %v187
    %403 = vmatmul.mubr.f32.gmra.mrb[0].mxu0 %v186
    %v404 = vpop.f32.mrb[0].mxu0
    %v405 = vadd.f32 %v321, %v404
    %v406 = vpop.f32.mrb[0].mxu0
    %v407 = vadd.f32 %v325, %v406
    %408 = vdwg.mxu0
    %409 = vmatprep.subr.mxu0 %v191
    %410 = vmatpush1.msra.mxu0 %v190
    %411 = vmatprep.subr.mxu0 %v195
    %412 = vmatpush1.msra.mxu0 %v194
    %413 = vmatprep.subr.mxu0 %v199
    %414 = vmatpush1.msra.mxu0 %v198
    %415 = vmatprep.subr.mxu0 %v203
    %416 = vmatpush1.msra.mxu0 %v202
    %417 = vmatprep.subr.mxu0 %v207
    %418 = vmatpush1.msra.mxu0 %v206
    %419 = vmatprep.subr.mxu0 %v211
    %420 = vmatpush1.msra.mxu0 %v210
    %421 = vmatprep.subr.mxu0 %v215
    %422 = vmatpush1.msra.mxu0 %v214
    %423 = vmatprep.subr.mxu0 %v219
    %424 = vmatpush1.msra.mxu0 %v218
    %425 = vmatprep.subr.mxu0 %v223
    %426 = vmatpush1.msra.mxu0 %v222
    %427 = vmatprep.subr.mxu0 %v227
    %428 = vmatpush1.msra.mxu0 %v226
    %429 = vmatprep.subr.mxu0 %v231
    %430 = vmatpush1.msra.mxu0 %v230
    %431 = vmatprep.subr.mxu0 %v235
    %432 = vmatpush1.msra.mxu0 %v234
    %433 = vmatprep.subr.mxu0 %v239
    %434 = vmatpush1.msra.mxu0 %v238
    %435 = vmatprep.subr.mxu0 %v243
    %436 = vmatpush1.msra.mxu0 %v242
    %437 = vmatprep.subr.mxu0 %v247
    %438 = vmatpush1.msra.mxu0 %v246
    %439 = vmatprep.subr.mxu0 %v251
    %440 = vmatpush1.msra.mxu0 %v250
    %441 = vmatprep.subr.mxu0 %v255
    %442 = vmatpush1.msra.mxu0 %v254
    %443 = vmatprep.subr.mxu0 %v259
    %444 = vmatpush1.msra.mxu0 %v258
    %445 = vmatprep.subr.mxu0 %v263
    %446 = vmatpush1.msra.mxu0 %v262
    %447 = vmatprep.subr.mxu0 %v267
    %448 = vmatpush1.msra.mxu0 %v266
    %449 = vmatprep.subr.mxu0 %v271
    %450 = vmatpush1.msra.mxu0 %v270
    %451 = vmatprep.subr.mxu0 %v275
    %452 = vmatpush1.msra.mxu0 %v274
    %453 = vmatprep.subr.mxu0 %v279
    %454 = vmatpush1.msra.mxu0 %v278
    %455 = vmatprep.subr.mxu0 %v283
    %456 = vmatpush1.msra.mxu0 %v282
    %457 = vmatprep.subr.mxu0 %v287
    %458 = vmatpush1.msra.mxu0 %v286
    %459 = vmatprep.subr.mxu0 %v291
    %460 = vmatpush1.msra.mxu0 %v290
    %461 = vmatprep.subr.mxu0 %v295
    %462 = vmatpush1.msra.mxu0 %v294
    %463 = vmatprep.subr.mxu0 %v299
    %464 = vmatpush1.msra.mxu0 %v298
    %465 = vmatprep.subr.mxu0 %v303
    %466 = vmatpush1.msra.mxu0 %v302
    %467 = vmatprep.subr.mxu0 %v307
    %468 = vmatpush1.msra.mxu0 %v306
    %469 = vmatprep.subr.mxu0 %v311
    %470 = vmatpush1.msra.mxu0 %v310
    %471 = vmatprep.subr.mxu0 %v315
    %472 = vmatpush1.msra.mxu0 %v314
    %473 = vmatprep.mubr.f32.mxu0 %v187
    %474 = vmatmul.mubr.f32.gmra.mrb[0].mxu0 %v186
    %v475 = vpop.f32.mrb[0].mxu0
    %v476 = vadd.f32 %v329, %v475
    %v477 = vpop.f32.mrb[0].mxu0
    %v478 = vadd.f32 %v333, %v477
    %479 = vdwg.mxu0
    %v480 = vmul.f32 %v405, 0.01
    %v481 = vmul.f32 %v407, 0.01
    %v482 = vmul.f32 %v476, 0.01
    %v483 = vmul.f32 %v478, 0.01
    %v484 = vmax.f32 %v405, %v480
    %v485 = vmax.f32 %v407, %v481
    %v486 = vmax.f32 %v476, %v482
    %v487 = vmax.f32 %v478, %v483
    %v488 = vld [vmem:[#allocation5] sm:$0xff]
    %v489 = vld [vmem:[#allocation5 + $0x8] sm:$0xff]
    %v490 = vld [vmem:[#allocation5 + $0x10] sm:$0xff]
    %v491 = vld [vmem:[#allocation5 + $0x18] sm:$0xff]
    %v492 = vld [vmem:[#allocation5 + $0x20] sm:$0xff]
    %v493 = vld [vmem:[#allocation5 + $0x28] sm:$0xff]
    %v494 = vld [vmem:[#allocation5 + $0x30] sm:$0xff]
    %v495 = vld [vmem:[#allocation5 + $0x38] sm:$0xff]
    %v496 = vld [vmem:[#allocation5 + $0x40] sm:$0xff]
    %v497 = vld [vmem:[#allocation5 + $0x48] sm:$0xff]
    %v498 = vld [vmem:[#allocation5 + $0x50] sm:$0xff]
    %v499 = vld [vmem:[#allocation5 + $0x58] sm:$0xff]
    %v500 = vld [vmem:[#allocation5 + $0x60] sm:$0xff]
    %v501 = vld [vmem:[#allocation5 + $0x68] sm:$0xff]
    %v502 = vld [vmem:[#allocation5 + $0x70] sm:$0xff]
    %v503 = vld [vmem:[#allocation5 + $0x78] sm:$0xff]
    %v504 = vld [vmem:[#allocation5 + $0x80] sm:$0xff]
    %v505 = vld [vmem:[#allocation5 + $0x88] sm:$0xff]
    %v506 = vld [vmem:[#allocation5 + $0x90] sm:$0xff]
    %v507 = vld [vmem:[#allocation5 + $0x98] sm:$0xff]
    %v508 = vld [vmem:[#allocation5 + $0xa0] sm:$0xff]
    %v509 = vld [vmem:[#allocation5 + $0xa8] sm:$0xff]
    %v510 = vld [vmem:[#allocation5 + $0xb0] sm:$0xff]
    %v511 = vld [vmem:[#allocation5 + $0xb8] sm:$0xff]
    %v512 = vld [vmem:[#allocation5 + $0xc0] sm:$0xff]
    %v513 = vld [vmem:[#allocation5 + $0xc8] sm:$0xff]
    %v514 = vld [vmem:[#allocation5 + $0xd0] sm:$0xff]
    %v515 = vld [vmem:[#allocation5 + $0xd8] sm:$0xff]
    %v516 = vld [vmem:[#allocation5 + $0xe0] sm:$0xff]
    %v517 = vld [vmem:[#allocation5 + $0xe8] sm:$0xff]
    %v518 = vld [vmem:[#allocation5 + $0xf0] sm:$0xff]
    %v519 = vld [vmem:[#allocation5 + $0xf8] sm:$0xff]
    %v520 = vld [vmem:[#allocation5 + $0x100] sm:$0xff]
    %v521 = vld [vmem:[#allocation5 + $0x108] sm:$0xff]
    %v522 = vld [vmem:[#allocation5 + $0x110] sm:$0xff]
    %v523 = vld [vmem:[#allocation5 + $0x118] sm:$0xff]
    %v524 = vld [vmem:[#allocation5 + $0x120] sm:$0xff]
    %v525 = vld [vmem:[#allocation5 + $0x128] sm:$0xff]
    %v526 = vld [vmem:[#allocation5 + $0x130] sm:$0xff]
    %v527 = vld [vmem:[#allocation5 + $0x138] sm:$0xff]
    %v528 = vld [vmem:[#allocation5 + $0x140] sm:$0xff]
    %v529 = vld [vmem:[#allocation5 + $0x148] sm:$0xff]
    %v530 = vld [vmem:[#allocation5 + $0x150] sm:$0xff]
    %v531 = vld [vmem:[#allocation5 + $0x158] sm:$0xff]
    %v532 = vld [vmem:[#allocation5 + $0x160] sm:$0xff]
    %v533 = vld [vmem:[#allocation5 + $0x168] sm:$0xff]
    %v534 = vld [vmem:[#allocation5 + $0x170] sm:$0xff]
    %v535 = vld [vmem:[#allocation5 + $0x178] sm:$0xff]
    %v536 = vld [vmem:[#allocation5 + $0x180] sm:$0xff]
    %v537 = vld [vmem:[#allocation5 + $0x188] sm:$0xff]
    %v538 = vld [vmem:[#allocation5 + $0x190] sm:$0xff]
    %v539 = vld [vmem:[#allocation5 + $0x198] sm:$0xff]
    %v540 = vld [vmem:[#allocation5 + $0x1a0] sm:$0xff]
    %v541 = vld [vmem:[#allocation5 + $0x1a8] sm:$0xff]
    %v542 = vld [vmem:[#allocation5 + $0x1b0] sm:$0xff]
    %v543 = vld [vmem:[#allocation5 + $0x1b8] sm:$0xff]
    %v544 = vld [vmem:[#allocation5 + $0x1c0] sm:$0xff]
    %v545 = vld [vmem:[#allocation5 + $0x1c8] sm:$0xff]
    %v546 = vld [vmem:[#allocation5 + $0x1d0] sm:$0xff]
    %v547 = vld [vmem:[#allocation5 + $0x1d8] sm:$0xff]
    %v548 = vld [vmem:[#allocation5 + $0x1e0] sm:$0xff]
    %v549 = vld [vmem:[#allocation5 + $0x1e8] sm:$0xff]
    %v550 = vld [vmem:[#allocation5 + $0x1f0] sm:$0xff]
    %v551 = vld [vmem:[#allocation5 + $0x1f8] sm:$0xff]
    %v552 = vld [vmem:[#allocation5 + $0x200] sm:$0xff]
    %v553 = vld [vmem:[#allocation5 + $0x208] sm:$0xff]
    %v554 = vld [vmem:[#allocation5 + $0x210] sm:$0xff]
    %v555 = vld [vmem:[#allocation5 + $0x218] sm:$0xff]
    %v556 = vld [vmem:[#allocation5 + $0x220] sm:$0xff]
    %v557 = vld [vmem:[#allocation5 + $0x228] sm:$0xff]
    %v558 = vld [vmem:[#allocation5 + $0x230] sm:$0xff]
    %v559 = vld [vmem:[#allocation5 + $0x238] sm:$0xff]
    %v560 = vld [vmem:[#allocation5 + $0x240] sm:$0xff]
    %v561 = vld [vmem:[#allocation5 + $0x248] sm:$0xff]
    %v562 = vld [vmem:[#allocation5 + $0x250] sm:$0xff]
    %v563 = vld [vmem:[#allocation5 + $0x258] sm:$0xff]
    %v564 = vld [vmem:[#allocation5 + $0x260] sm:$0xff]
    %v565 = vld [vmem:[#allocation5 + $0x268] sm:$0xff]
    %v566 = vld [vmem:[#allocation5 + $0x270] sm:$0xff]
    %v567 = vld [vmem:[#allocation5 + $0x278] sm:$0xff]
    %v568 = vld [vmem:[#allocation5 + $0x280] sm:$0xff]
    %v569 = vld [vmem:[#allocation5 + $0x288] sm:$0xff]
    %v570 = vld [vmem:[#allocation5 + $0x290] sm:$0xff]
    %v571 = vld [vmem:[#allocation5 + $0x298] sm:$0xff]
    %v572 = vld [vmem:[#allocation5 + $0x2a0] sm:$0xff]
    %v573 = vld [vmem:[#allocation5 + $0x2a8] sm:$0xff]
    %v574 = vld [vmem:[#allocation5 + $0x2b0] sm:$0xff]
    %v575 = vld [vmem:[#allocation5 + $0x2b8] sm:$0xff]
    %v576 = vld [vmem:[#allocation5 + $0x2c0] sm:$0xff]
    %v577 = vld [vmem:[#allocation5 + $0x2c8] sm:$0xff]
    %v578 = vld [vmem:[#allocation5 + $0x2d0] sm:$0xff]
    %v579 = vld [vmem:[#allocation5 + $0x2d8] sm:$0xff]
    %v580 = vld [vmem:[#allocation5 + $0x2e0] sm:$0xff]
    %v581 = vld [vmem:[#allocation5 + $0x2e8] sm:$0xff]
    %v582 = vld [vmem:[#allocation5 + $0x2f0] sm:$0xff]
    %v583 = vld [vmem:[#allocation5 + $0x2f8] sm:$0xff]
    %v584 = vld [vmem:[#allocation5 + $0x300] sm:$0xff]
    %v585 = vld [vmem:[#allocation5 + $0x308] sm:$0xff]
    %v586 = vld [vmem:[#allocation5 + $0x310] sm:$0xff]
    %v587 = vld [vmem:[#allocation5 + $0x318] sm:$0xff]
    %v588 = vld [vmem:[#allocation5 + $0x320] sm:$0xff]
    %v589 = vld [vmem:[#allocation5 + $0x328] sm:$0xff]
    %v590 = vld [vmem:[#allocation5 + $0x330] sm:$0xff]
    %v591 = vld [vmem:[#allocation5 + $0x338] sm:$0xff]
    %v592 = vld [vmem:[#allocation5 + $0x340] sm:$0xff]
    %v593 = vld [vmem:[#allocation5 + $0x348] sm:$0xff]
    %v594 = vld [vmem:[#allocation5 + $0x350] sm:$0xff]
    %v595 = vld [vmem:[#allocation5 + $0x358] sm:$0xff]
    %v596 = vld [vmem:[#allocation5 + $0x360] sm:$0xff]
    %v597 = vld [vmem:[#allocation5 + $0x368] sm:$0xff]
    %v598 = vld [vmem:[#allocation5 + $0x370] sm:$0xff]
    %v599 = vld [vmem:[#allocation5 + $0x378] sm:$0xff]
    %v600 = vld [vmem:[#allocation5 + $0x380] sm:$0xff]
    %v601 = vld [vmem:[#allocation5 + $0x388] sm:$0xff]
    %v602 = vld [vmem:[#allocation5 + $0x390] sm:$0xff]
    %v603 = vld [vmem:[#allocation5 + $0x398] sm:$0xff]
    %v604 = vld [vmem:[#allocation5 + $0x3a0] sm:$0xff]
    %v605 = vld [vmem:[#allocation5 + $0x3a8] sm:$0xff]
    %v606 = vld [vmem:[#allocation5 + $0x3b0] sm:$0xff]
    %v607 = vld [vmem:[#allocation5 + $0x3b8] sm:$0xff]
    %v608 = vld [vmem:[#allocation5 + $0x3c0] sm:$0xff]
    %v609 = vld [vmem:[#allocation5 + $0x3c8] sm:$0xff]
    %v610 = vld [vmem:[#allocation5 + $0x3d0] sm:$0xff]
    %v611 = vld [vmem:[#allocation5 + $0x3d8] sm:$0xff]
    %v612 = vld [vmem:[#allocation5 + $0x3e0] sm:$0xff]
    %v613 = vld [vmem:[#allocation5 + $0x3e8] sm:$0xff]
    %v614 = vld [vmem:[#allocation5 + $0x3f0] sm:$0xff]
    %v615 = vld [vmem:[#allocation5 + $0x3f8] sm:$0xff]
    %v616 = vld [vmem:[%s6] sm:$0x3]
    %v618 = vlaneseq
    %v619 = vshrl.u32 %v618, 7
    %v620 = vsub.s32 0, %v619
    %v621 = vrot.slane %v616, %v620
    %v622 = vlaneseq
    %v623 = vshrl.u32 %v622, 7
    %v624 = vsub.s32 1, %v623
    %v625 = vrot.slane %v616, %v624
    %628 = vmatprep.subr.mxu0 %v489
    %629 = vmatpush1.msra.mxu0 %v488
    %630 = vmatprep.subr.mxu0 %v491
    %631 = vmatpush1.msra.mxu0 %v490
    %632 = vmatprep.subr.mxu0 %v493
    %633 = vmatpush1.msra.mxu0 %v492
    %634 = vmatprep.subr.mxu0 %v495
    %635 = vmatpush1.msra.mxu0 %v494
    %636 = vmatprep.subr.mxu0 %v497
    %637 = vmatpush1.msra.mxu0 %v496
    %638 = vmatprep.subr.mxu0 %v499
    %639 = vmatpush1.msra.mxu0 %v498
    %640 = vmatprep.subr.mxu0 %v501
    %641 = vmatpush1.msra.mxu0 %v500
    %642 = vmatprep.subr.mxu0 %v503
    %643 = vmatpush1.msra.mxu0 %v502
    %644 = vmatprep.subr.mxu0 %v505
    %645 = vmatpush1.msra.mxu0 %v504
    %646 = vmatprep.subr.mxu0 %v507
    %647 = vmatpush1.msra.mxu0 %v506
    %648 = vmatprep.subr.mxu0 %v509
    %649 = vmatpush1.msra.mxu0 %v508
    %650 = vmatprep.subr.mxu0 %v511
    %651 = vmatpush1.msra.mxu0 %v510
    %652 = vmatprep.subr.mxu0 %v513
    %653 = vmatpush1.msra.mxu0 %v512
    %654 = vmatprep.subr.mxu0 %v515
    %655 = vmatpush1.msra.mxu0 %v514
    %656 = vmatprep.subr.mxu0 %v517
    %657 = vmatpush1.msra.mxu0 %v516
    %658 = vmatprep.subr.mxu0 %v519
    %659 = vmatpush1.msra.mxu0 %v518
    %660 = vmatprep.subr.mxu0 %v521
    %661 = vmatpush1.msra.mxu0 %v520
    %662 = vmatprep.subr.mxu0 %v523
    %663 = vmatpush1.msra.mxu0 %v522
    %664 = vmatprep.subr.mxu0 %v525
    %665 = vmatpush1.msra.mxu0 %v524
    %666 = vmatprep.subr.mxu0 %v527
    %667 = vmatpush1.msra.mxu0 %v526
    %668 = vmatprep.subr.mxu0 %v529
    %669 = vmatpush1.msra.mxu0 %v528
    %670 = vmatprep.subr.mxu0 %v531
    %671 = vmatpush1.msra.mxu0 %v530
    %672 = vmatprep.subr.mxu0 %v533
    %673 = vmatpush1.msra.mxu0 %v532
    %674 = vmatprep.subr.mxu0 %v535
    %675 = vmatpush1.msra.mxu0 %v534
    %676 = vmatprep.subr.mxu0 %v537
    %677 = vmatpush1.msra.mxu0 %v536
    %678 = vmatprep.subr.mxu0 %v539
    %679 = vmatpush1.msra.mxu0 %v538
    %680 = vmatprep.subr.mxu0 %v541
    %681 = vmatpush1.msra.mxu0 %v540
    %682 = vmatprep.subr.mxu0 %v543
    %683 = vmatpush1.msra.mxu0 %v542
    %684 = vmatprep.subr.mxu0 %v545
    %685 = vmatpush1.msra.mxu0 %v544
    %686 = vmatprep.subr.mxu0 %v547
    %687 = vmatpush1.msra.mxu0 %v546
    %688 = vmatprep.subr.mxu0 %v549
    %689 = vmatpush1.msra.mxu0 %v548
    %690 = vmatprep.subr.mxu0 %v551
    %691 = vmatpush1.msra.mxu0 %v550
    %692 = vmatprep.mubr.f32.mxu0 %v485
    %693 = vmatmul.mubr.f32.gmra.mrb[0].mxu0 %v484
    %v694 = vpop.f32.mrb[0].mxu0
    %v695 = vadd.f32 %v621, %v694
    %v696 = vpop.f32.mrb[0].mxu0
    %v697 = vadd.f32 %v625, %v696
    %698 = vdwg.mxu0
    %699 = vmatprep.subr.mxu0 %v553
    %700 = vmatpush1.msra.mxu0 %v552
    %701 = vmatprep.subr.mxu0 %v555
    %702 = vmatpush1.msra.mxu0 %v554
    %703 = vmatprep.subr.mxu0 %v557
    %704 = vmatpush1.msra.mxu0 %v556
    %705 = vmatprep.subr.mxu0 %v559
    %706 = vmatpush1.msra.mxu0 %v558
    %707 = vmatprep.subr.mxu0 %v561
    %708 = vmatpush1.msra.mxu0 %v560
    %709 = vmatprep.subr.mxu0 %v563
    %710 = vmatpush1.msra.mxu0 %v562
    %711 = vmatprep.subr.mxu0 %v565
    %712 = vmatpush1.msra.mxu0 %v564
    %713 = vmatprep.subr.mxu0 %v567
    %714 = vmatpush1.msra.mxu0 %v566
    %715 = vmatprep.subr.mxu0 %v569
    %716 = vmatpush1.msra.mxu0 %v568
    %717 = vmatprep.subr.mxu0 %v571
    %718 = vmatpush1.msra.mxu0 %v570
    %719 = vmatprep.subr.mxu0 %v573
    %720 = vmatpush1.msra.mxu0 %v572
    %721 = vmatprep.subr.mxu0 %v575
    %722 = vmatpush1.msra.mxu0 %v574
    %723 = vmatprep.subr.mxu0 %v577
    %724 = vmatpush1.msra.mxu0 %v576
    %725 = vmatprep.subr.mxu0 %v579
    %726 = vmatpush1.msra.mxu0 %v578
    %727 = vmatprep.subr.mxu0 %v581
    %728 = vmatpush1.msra.mxu0 %v580
    %729 = vmatprep.subr.mxu0 %v583
    %730 = vmatpush1.msra.mxu0 %v582
    %731 = vmatprep.subr.mxu0 %v585
    %732 = vmatpush1.msra.mxu0 %v584
    %733 = vmatprep.subr.mxu0 %v587
    %734 = vmatpush1.msra.mxu0 %v586
    %735 = vmatprep.subr.mxu0 %v589
    %736 = vmatpush1.msra.mxu0 %v588
    %737 = vmatprep.subr.mxu0 %v591
    %738 = vmatpush1.msra.mxu0 %v590
    %739 = vmatprep.subr.mxu0 %v593
    %740 = vmatpush1.msra.mxu0 %v592
    %741 = vmatprep.subr.mxu0 %v595
    %742 = vmatpush1.msra.mxu0 %v594
    %743 = vmatprep.subr.mxu0 %v597
    %744 = vmatpush1.msra.mxu0 %v596
    %745 = vmatprep.subr.mxu0 %v599
    %746 = vmatpush1.msra.mxu0 %v598
    %747 = vmatprep.subr.mxu0 %v601
    %748 = vmatpush1.msra.mxu0 %v600
    %749 = vmatprep.subr.mxu0 %v603
    %750 = vmatpush1.msra.mxu0 %v602
    %751 = vmatprep.subr.mxu0 %v605
    %752 = vmatpush1.msra.mxu0 %v604
    %753 = vmatprep.subr.mxu0 %v607
    %754 = vmatpush1.msra.mxu0 %v606
    %755 = vmatprep.subr.mxu0 %v609
    %756 = vmatpush1.msra.mxu0 %v608
    %757 = vmatprep.subr.mxu0 %v611
    %758 = vmatpush1.msra.mxu0 %v610
    %759 = vmatprep.subr.mxu0 %v613
    %760 = vmatpush1.msra.mxu0 %v612
    %761 = vmatprep.subr.mxu0 %v615
    %762 = vmatpush1.msra.mxu0 %v614
    %763 = vmatprep.mubr.f32.mxu0 %v487
    %764 = vmatmul.mubr.f32.gmra.mrb[0].mxu0 %v486
    %v765 = vpop.f32.mrb[0].mxu0
    %v766 = vadd.f32 %v695, %v765
    %v767 = vpop.f32.mrb[0].mxu0
    %v768 = vadd.f32 %v697, %v767
    %769 = vdwg.mxu0
    %v770 = vmul.f32 %v766, 0.01
    %v771 = vmul.f32 %v768, 0.01
    %v772 = vmax.f32 %v766, %v770
    %v773 = vmax.f32 %v768, %v771
    %v774 = vld [vmem:[%s7] sm:$0xff]
    %v775 = vld [vmem:[%s7 + $0x8] sm:$0xff]
    %v776 = vld [vmem:[%s7 + $0x10] sm:$0xff]
    %v777 = vld [vmem:[%s7 + $0x18] sm:$0xff]
    %v778 = vld [vmem:[%s7 + $0x20] sm:$0xff]
    %v779 = vld [vmem:[%s7 + $0x28] sm:$0xff]
    %v780 = vld [vmem:[%s7 + $0x30] sm:$0xff]
    %v781 = vld [vmem:[%s7 + $0x38] sm:$0xff]
    %v782 = vld [vmem:[%s7 + $0x40] sm:$0xff]
    %v783 = vld [vmem:[%s7 + $0x48] sm:$0xff]
    %v784 = vld [vmem:[%s7 + $0x50] sm:$0xff]
    %v785 = vld [vmem:[%s7 + $0x58] sm:$0xff]
    %v786 = vld [vmem:[%s7 + $0x60] sm:$0xff]
    %v787 = vld [vmem:[%s7 + $0x68] sm:$0xff]
    %v788 = vld [vmem:[%s7 + $0x70] sm:$0xff]
    %v789 = vld [vmem:[%s7 + $0x78] sm:$0xff]
    %v790 = vld [vmem:[%s7 + $0x80] sm:$0xff]
    %v791 = vld [vmem:[%s7 + $0x88] sm:$0xff]
    %v792 = vld [vmem:[%s7 + $0x90] sm:$0xff]
    %v793 = vld [vmem:[%s7 + $0x98] sm:$0xff]
    %v794 = vld [vmem:[%s7 + $0xa0] sm:$0xff]
    %v795 = vld [vmem:[%s7 + $0xa8] sm:$0xff]
    %v796 = vld [vmem:[%s7 + $0xb0] sm:$0xff]
    %v797 = vld [vmem:[%s7 + $0xb8] sm:$0xff]
    %v798 = vld [vmem:[%s7 + $0xc0] sm:$0xff]
    %v799 = vld [vmem:[%s7 + $0xc8] sm:$0xff]
    %v800 = vld [vmem:[%s7 + $0xd0] sm:$0xff]
    %v801 = vld [vmem:[%s7 + $0xd8] sm:$0xff]
    %v802 = vld [vmem:[%s7 + $0xe0] sm:$0xff]
    %v803 = vld [vmem:[%s7 + $0xe8] sm:$0xff]
    %v804 = vld [vmem:[%s7 + $0xf0] sm:$0xff]
    %v805 = vld [vmem:[%s7 + $0xf8] sm:$0xff]
    %v806 = vld [vmem:[%s8] sm:$0x1]
    %v808 = vlaneseq
    %v809 = vshrl.u32 %v808, 7
    %v810 = vsub.s32 0, %v809
    %v811 = vrot.slane %v806, %v810
    %813 = vmatprep.subr.mxu0 0.0
    %814 = vmatpush1.msra.mxu0 %v774
    %815 = vmatprep.subr.mxu0 0.0
    %816 = vmatpush1.msra.mxu0 %v775
    %817 = vmatprep.subr.mxu0 0.0
    %818 = vmatpush1.msra.mxu0 %v776
    %819 = vmatprep.subr.mxu0 0.0
    %820 = vmatpush1.msra.mxu0 %v777
    %821 = vmatprep.subr.mxu0 0.0
    %822 = vmatpush1.msra.mxu0 %v778
    %823 = vmatprep.subr.mxu0 0.0
    %824 = vmatpush1.msra.mxu0 %v779
    %825 = vmatprep.subr.mxu0 0.0
    %826 = vmatpush1.msra.mxu0 %v780
    %827 = vmatprep.subr.mxu0 0.0
    %828 = vmatpush1.msra.mxu0 %v781
    %829 = vmatprep.subr.mxu0 0.0
    %830 = vmatpush1.msra.mxu0 %v782
    %831 = vmatprep.subr.mxu0 0.0
    %832 = vmatpush1.msra.mxu0 %v783
    %833 = vmatprep.subr.mxu0 0.0
    %834 = vmatpush1.msra.mxu0 %v784
    %835 = vmatprep.subr.mxu0 0.0
    %836 = vmatpush1.msra.mxu0 %v785
    %837 = vmatprep.subr.mxu0 0.0
    %838 = vmatpush1.msra.mxu0 %v786
    %839 = vmatprep.subr.mxu0 0.0
    %840 = vmatpush1.msra.mxu0 %v787
    %841 = vmatprep.subr.mxu0 0.0
    %842 = vmatpush1.msra.mxu0 %v788
    %843 = vmatprep.subr.mxu0 0.0
    %844 = vmatpush1.msra.mxu0 %v789
    %845 = vmatprep.subr.mxu0 0.0
    %846 = vmatpush1.msra.mxu0 %v790
    %847 = vmatprep.subr.mxu0 0.0
    %848 = vmatpush1.msra.mxu0 %v791
    %849 = vmatprep.subr.mxu0 0.0
    %850 = vmatpush1.msra.mxu0 %v792
    %851 = vmatprep.subr.mxu0 0.0
    %852 = vmatpush1.msra.mxu0 %v793
    %853 = vmatprep.subr.mxu0 0.0
    %854 = vmatpush1.msra.mxu0 %v794
    %855 = vmatprep.subr.mxu0 0.0
    %856 = vmatpush1.msra.mxu0 %v795
    %857 = vmatprep.subr.mxu0 0.0
    %858 = vmatpush1.msra.mxu0 %v796
    %859 = vmatprep.subr.mxu0 0.0
    %860 = vmatpush1.msra.mxu0 %v797
    %861 = vmatprep.subr.mxu0 0.0
    %862 = vmatpush1.msra.mxu0 %v798
    %863 = vmatprep.subr.mxu0 0.0
    %864 = vmatpush1.msra.mxu0 %v799
    %865 = vmatprep.subr.mxu0 0.0
    %866 = vmatpush1.msra.mxu0 %v800
    %867 = vmatprep.subr.mxu0 0.0
    %868 = vmatpush1.msra.mxu0 %v801
    %869 = vmatprep.subr.mxu0 0.0
    %870 = vmatpush1.msra.mxu0 %v802
    %871 = vmatprep.subr.mxu0 0.0
    %872 = vmatpush1.msra.mxu0 %v803
    %873 = vmatprep.subr.mxu0 0.0
    %874 = vmatpush1.msra.mxu0 %v804
    %875 = vmatprep.subr.mxu0 0.0
    %876 = vmatpush1.msra.mxu0 %v805
    %877 = vmatprep.mubr.f32.mxu0 %v773
    %878 = vmatmul.mubr.f32.gmra.mrb[0].mxu0 %v772
    %v879 = vpop.f32.mrb[0].mxu0
    %v880 = vadd.f32 %v811, %v879
    %v881 = vpop.f32.mrb[0].mxu0
    %882 = vdwg.mxu0
    %v883 = vmul.f32 %v880, 0.01
    %v884 = vmax.f32 %v880, %v883
    %v885 = vld [vmem:[%s9] sm:$0x1]
    %v887 = vlaneseq
    %v888 = vshrl.u32 %v887, 7
    %v889 = vsub.s32 0, %v888
    %v890 = vrot.slane %v885, %v889
    %v892 = vmul.f32 %v884, %v890
    %893 = vadd.xlane.f32.xlu0 %v892
    %v894 = vpop.xlane.xlu0 %893
    %v895 = vld [vmem:[#allocation2] sm:$0x1]
    %v897 = vlaneseq
    %v898 = vshrl.u32 %v897, 7
    %v899 = vsub.s32 0, %v898
    %v900 = vrot.slane %v895, %v899
    %v902 = vadd.f32 %v894, %v900
    %v903 = vxor.u32 %v902, 2147483648
    %v904 = vmul.f32 %v903, 1.442695
    %v905 = vpow.pop %v904
    %v906 = vadd.f32 %v905, 1.0
    %v907 = vrcp.pop %v906
    %v908 = vmul.f32 1.0, %v907
    %vm909 = vcmask 7168
    %910 = vst.msk [vmem:[%s11] sm:$0xff] %vm909, %v908
    // Predicated region
    $region54: #{discriminator_forward.1} parent=1 // pred_check
      _
    $region55: #{discriminator_forward.1} parent=1 // pred_check_branch
      %912 = sbr.rel (0) target = $region57
    $region56: #{discriminator_forward.1} parent=1 // pred_region
      _
    $region57: #{discriminator_forward.1} parent=1 // pred_fallthru
      _
    // Predicated region
    $region58: #{discriminator_forward.1} parent=1 // pred_check
      _
    $region59: #{discriminator_forward.1} parent=1 // pred_check_branch
      %914 = sbr.rel (0) target = $region61
    $region60: #{discriminator_forward.1} parent=1 // pred_region
      _
    $region61: #{discriminator_forward.1} parent=1 // pred_fallthru
      _
    %915 = vsyncpa [#allocation4], 1
    %916 = vsyncpa [#allocation6], 1

</llo_original>
